<compile_context>
chip_gen: v7x
topology: tpu7x:2x2x1
jax: 0.10.0
libtpu: 0.0.40
codegen_flags: <defaults>
</compile_context>

<pallas_src>
import jax
import jax.numpy as jnp
from jax.experimental import pallas as pl
from jax.experimental.pallas import tpu as pltpu

LATENT_DIM = 384
H1 = 256
H2 = 128
OUT = 6
OUT_PAD = 128      # padded width for layer-3 matmul / softmax (free on the MXU)
OUT_STORE = 8      # narrow lane count actually stored to HBM (>= OUT, full last dim)
TB = 2048          # batch tile; amortizes per-grid-step overhead
NEG_PAD = -1e9     # finite large-negative bias for padded softmax lanes (not -inf)


def _round_up(n, m):
    return ((n + m - 1) // m) * m


def noise_predictor_kernel(x_ref, w1_ref, b1_ref, w2_ref, b2_ref, w3_ref, b3_ref, o_ref):
    # x streamed as f32; cast to bf16 in-kernel (hidden under MXU) instead of a
    # separate wrapper-side convert pass over x in HBM.
    x = x_ref[...].astype(jnp.bfloat16)                                   # [tb, 384]

    # Layer 1: Linear(384 -> 256) + ReLU   (bf16 MXU operands, f32 accumulation)
    h1 = jnp.dot(x, w1_ref[...], preferred_element_type=jnp.float32) + b1_ref[...]
    h1 = jnp.maximum(h1, 0.0).astype(jnp.bfloat16)

    # Layer 2: Linear(256 -> 128) + ReLU
    h2 = jnp.dot(h1, w2_ref[...], preferred_element_type=jnp.float32) + b2_ref[...]
    h2 = jnp.maximum(h2, 0.0).astype(jnp.bfloat16)

    # Layer 3: Linear(128 -> 6), padded to 128 output lanes (padded lanes carry
    # bias -1e9 so they vanish in the softmax). Padded N costs no extra MXU time.
    logits = jnp.dot(h2, w3_ref[...], preferred_element_type=jnp.float32) + b3_ref[...]

    # Numerically stable softmax over 128 lanes; padded lanes -> exp(~-1e9) == 0.
    m = jnp.max(logits, axis=-1, keepdims=True)
    e = jnp.exp(logits - m)
    inv = pl.reciprocal(jnp.sum(e, axis=-1, keepdims=True), approx=True)   # EUP
    probs = e * inv

    # Narrow store: only the first OUT_STORE (=8) lanes go back to HBM.
    o_ref[...] = probs[:, :OUT_STORE].astype(o_ref.dtype)


def noise_predictor(x, params, tile_b=TB):
    """x: [B, latent_dim] f32 -> [B, 6] f32 softmax probabilities."""
    w1, b1, w2, b2, w3p, b3p = params
    B = x.shape[0]

    # Minimal sublane padding only (<= 7 rows); ragged tails handled by the grid.
    B_pad = _round_up(max(B, 1), 8)
    if B_pad != B:
        x = jnp.pad(x, ((0, B_pad - B), (0, 0)))

    # Batch tile: multiple of 8 sublanes; when there is enough work, aim for >= 2
    # grid steps so the "parallel" axis shards across both TensorCores on v7x.
    tb = min(tile_b, max(_round_up(pl.cdiv(B_pad, 2), 8), 8))
    grid = (pl.cdiv(B_pad, tb),)

    flops = 2 * B_pad * (LATENT_DIM * H1 + H1 * H2 + H2 * OUT_PAD)
    transcendentals = B_pad * (OUT_PAD + 1)              # exp per lane + recip per row
    bytes_accessed = (
        B_pad * LATENT_DIM * 4 + B_pad * OUT_STORE * 4
        + (LATENT_DIM * H1 + H1 * H2 + H2 * OUT_PAD) * 2
        + (H1 + H2 + OUT_PAD) * 4)

    out = pl.pallas_call(
        noise_predictor_kernel,
        out_shape=jax.ShapeDtypeStruct((B_pad, OUT_STORE), jnp.float32),
        grid=grid,
        in_specs=[
            pl.BlockSpec((tb, LATENT_DIM), lambda i: (i, 0)),   # x: streamed f32 tile
            pl.BlockSpec((LATENT_DIM, H1), lambda i: (0, 0)),   # weights/biases resident,
            pl.BlockSpec((1, H1), lambda i: (0, 0)),            # constant block index
            pl.BlockSpec((H1, H2), lambda i: (0, 0)),
            pl.BlockSpec((1, H2), lambda i: (0, 0)),
            pl.BlockSpec((H2, OUT_PAD), lambda i: (0, 0)),
            pl.BlockSpec((1, OUT_PAD), lambda i: (0, 0)),
        ],
        out_specs=pl.BlockSpec((tb, OUT_STORE), lambda i: (i, 0)),
        compiler_params=pltpu.CompilerParams(
            dimension_semantics=("parallel",),          # megacore batch sharding (v7x)
            vmem_limit_bytes=48 * 1024 * 1024),         # safe on v7x (64 MiB physical)
        cost_estimate=pl.CostEstimate(
            flops=flops, transcendentals=transcendentals, bytes_accessed=bytes_accessed),
    )(x, w1, b1, w2, b2, w3p, b3p)

    return out[:B, :OUT]


def init_params(key):
    """Deterministic synthetic parameters matching nn.Linear shapes.

    Stored transposed relative to PyTorch ([in, out] instead of [out, in]) so the
    kernel computes x @ W. Biases kept 2-D ([1, out]) for TPU layout.
    """
    k1, k2, k3, k4, k5, k6 = jax.random.split(key, 6)

    def lin(kw, kb, fan_in, fan_out):
        bound = 1.0 / jnp.sqrt(fan_in)
        w = jax.random.uniform(kw, (fan_in, fan_out), jnp.float32, -bound, bound)
        b = jax.random.uniform(kb, (1, fan_out), jnp.float32, -bound, bound)
        return w, b

    w1, b1 = lin(k1, k4, LATENT_DIM, H1)
    w2, b2 = lin(k2, k5, H1, H2)
    w3, b3 = lin(k3, k6, H2, OUT)
    return (w1, b1, w2, b2, w3, b3)


def prepare_params(params):
    """Kernel-format params: bf16 weights, f32 biases, layer 3 padded to 128 lanes."""
    w1, b1, w2, b2, w3, b3 = params
    w3p = jnp.zeros((H2, OUT_PAD), jnp.float32).at[:, :OUT].set(w3)
    b3p = jnp.full((1, OUT_PAD), NEG_PAD, jnp.float32).at[:, :OUT].set(b3)
    return (w1.astype(jnp.bfloat16), b1,
            w2.astype(jnp.bfloat16), b2,
            w3p.astype(jnp.bfloat16), b3p)


def reference_mirror(x, kparams):
    """Pure-JAX mirror of the kernel math (same bf16 cast points, f32 accumulation)."""
    w1, b1, w2, b2, w3p, b3p = kparams
    xb = x.astype(jnp.bfloat16)
    h1 = jnp.maximum(jnp.dot(xb, w1, preferred_element_type=jnp.float32) + b1, 0.0)
    h1 = h1.astype(jnp.bfloat16)
    h2 = jnp.maximum(jnp.dot(h1, w2, preferred_element_type=jnp.float32) + b2, 0.0)
    h2 = h2.astype(jnp.bfloat16)
    logits = jnp.dot(h2, w3p, preferred_element_type=jnp.float32) + b3p
    return jax.nn.softmax(logits, axis=-1)[:, :OUT]


def reference_f32(x, params):
    """Full-precision reference matching the original PyTorch module."""
    w1, b1, w2, b2, w3, b3 = params
    h = jnp.maximum(x @ w1 + b1, 0.0)
    h = jnp.maximum(h @ w2 + b2, 0.0)
    return jax.nn.softmax(h @ w3 + b3, axis=-1)


if __name__ == "__main__":
    key = jax.random.PRNGKey(0)
    kx, kp = jax.random.split(key)
    B = 2
    x = jax.random.normal(kx, (B, LATENT_DIM), jnp.float32)
    master = init_params(kp)
    kparams = prepare_params(master)

    out = noise_predictor(x, kparams)
    out = jax.block_until_ready(out)

    assert out.shape == (B, OUT)
    # Mirror (same bf16 cast points) reference: tight-ish tolerance
    # (difference is the EUP approx reciprocal, ~1e-3 relative).
    ref_m = reference_mirror(x, kparams)
    assert jnp.allclose(out, ref_m, atol=2e-3, rtol=1e-2), "mismatch vs bf16 mirror reference"
    # Full-f32 reference: semantics-preservation check (difference is bf16 rounding only).
    ref_f = reference_f32(x, master)
    assert jnp.allclose(out, ref_f, atol=1e-2), "mismatch vs f32 reference"
    assert jnp.allclose(jnp.sum(out, axis=-1), 1.0, atol=5e-3), "softmax rows must sum to ~1"

    print("KERNEL_OK")
</pallas_src>

<mosaic_0001>
module attributes {stable_mosaic.version = 11 : i64} {
  func.func @noise_predictor_kernel(%arg0: i32, %arg1: memref<8x384xf32, #tpu.memory_space<vmem>>, %arg2: memref<384x256xbf16, #tpu.memory_space<vmem>>, %arg3: memref<1x256xf32, #tpu.memory_space<vmem>>, %arg4: memref<256x128xbf16, #tpu.memory_space<vmem>>, %arg5: memref<1x128xf32, #tpu.memory_space<vmem>>, %arg6: memref<128x128xbf16, #tpu.memory_space<vmem>>, %arg7: memref<1x128xf32, #tpu.memory_space<vmem>>, %arg8: memref<8x8xf32, #tpu.memory_space<vmem>>) attributes {dimension_semantics = [#tpu.dimension_semantics<parallel>], iteration_bounds = array<i64: 1>, scalar_prefetch = 0 : i64, scratch_operands = 0 : i64, tpu.core_type = #tpu.core_type<tc>, window_params = [{transform_indices = @transform_0, window_bounds = array<i64: 8, 384>}, {pipeline_mode = #tpu.pipeline_mode<synchronous>, transform_indices = @transform_1, window_bounds = array<i64: 384, 256>}, {pipeline_mode = #tpu.pipeline_mode<synchronous>, transform_indices = @transform_2, window_bounds = array<i64: 1, 256>}, {pipeline_mode = #tpu.pipeline_mode<synchronous>, transform_indices = @transform_3, window_bounds = array<i64: 256, 128>}, {pipeline_mode = #tpu.pipeline_mode<synchronous>, transform_indices = @transform_4, window_bounds = array<i64: 1, 128>}, {pipeline_mode = #tpu.pipeline_mode<synchronous>, transform_indices = @transform_5, window_bounds = array<i64: 128, 128>}, {pipeline_mode = #tpu.pipeline_mode<synchronous>, transform_indices = @transform_6, window_bounds = array<i64: 1, 128>}, {transform_indices = @transform_7, window_bounds = array<i64: 8, 8>}]} {
    %c0 = arith.constant 0 : index
    %c0_0 = arith.constant 0 : index
    %0 = vector.load %arg1[%c0, %c0_0] : memref<8x384xf32, #tpu.memory_space<vmem>>, vector<8x384xf32>
    %1 = arith.truncf %0 : vector<8x384xf32> to vector<8x384xbf16>
    %c0_1 = arith.constant 0 : index
    %c0_2 = arith.constant 0 : index
    %2 = vector.load %arg2[%c0_1, %c0_2] : memref<384x256xbf16, #tpu.memory_space<vmem>>, vector<384x256xbf16>
    %cst = arith.constant dense<0.000000e+00> : vector<8x256xf32>
    %3 = tpu.matmul %1, %2, %cst {dimension_numbers = #tpu.dot_dimension_numbers<[1], [0], [0], [1], [0, 0, 1, 1], [], []>} : vector<8x384xbf16>, vector<384x256xbf16>, vector<8x256xf32> -> vector<8x256xf32>
    %c0_3 = arith.constant 0 : index
    %c0_4 = arith.constant 0 : index
    %4 = vector.load %arg3[%c0_3, %c0_4] : memref<1x256xf32, #tpu.memory_space<vmem>>, vector<1x256xf32>
    %5 = vector.broadcast %4 : vector<1x256xf32> to vector<8x256xf32>
    %6 = arith.addf %3, %5 : vector<8x256xf32>
    %cst_5 = arith.constant 0.000000e+00 : f32
    %7 = vector.broadcast %cst_5 : f32 to vector<8x256xf32>
    %8 = arith.maximumf %6, %7 : vector<8x256xf32>
    %9 = arith.truncf %8 : vector<8x256xf32> to vector<8x256xbf16>
    %c0_6 = arith.constant 0 : index
    %c0_7 = arith.constant 0 : index
    %10 = vector.load %arg4[%c0_6, %c0_7] : memref<256x128xbf16, #tpu.memory_space<vmem>>, vector<256x128xbf16>
    %cst_8 = arith.constant dense<0.000000e+00> : vector<8x128xf32>
    %11 = tpu.matmul %9, %10, %cst_8 {dimension_numbers = #tpu.dot_dimension_numbers<[1], [0], [0], [1], [0, 0, 1, 1], [], []>} : vector<8x256xbf16>, vector<256x128xbf16>, vector<8x128xf32> -> vector<8x128xf32>
    %c0_9 = arith.constant 0 : index
    %c0_10 = arith.constant 0 : index
    %12 = vector.load %arg5[%c0_9, %c0_10] : memref<1x128xf32, #tpu.memory_space<vmem>>, vector<1x128xf32>
    %13 = vector.broadcast %12 : vector<1x128xf32> to vector<8x128xf32>
    %14 = arith.addf %11, %13 : vector<8x128xf32>
    %cst_11 = arith.constant 0.000000e+00 : f32
    %15 = vector.broadcast %cst_11 : f32 to vector<8x128xf32>
    %16 = arith.maximumf %14, %15 : vector<8x128xf32>
    %17 = arith.truncf %16 : vector<8x128xf32> to vector<8x128xbf16>
    %c0_12 = arith.constant 0 : index
    %c0_13 = arith.constant 0 : index
    %18 = vector.load %arg6[%c0_12, %c0_13] : memref<128x128xbf16, #tpu.memory_space<vmem>>, vector<128x128xbf16>
    %cst_14 = arith.constant dense<0.000000e+00> : vector<8x128xf32>
    %19 = tpu.matmul %17, %18, %cst_14 {dimension_numbers = #tpu.dot_dimension_numbers<[1], [0], [0], [1], [0, 0, 1, 1], [], []>} : vector<8x128xbf16>, vector<128x128xbf16>, vector<8x128xf32> -> vector<8x128xf32>
    %c0_15 = arith.constant 0 : index
    %c0_16 = arith.constant 0 : index
    %20 = vector.load %arg7[%c0_15, %c0_16] : memref<1x128xf32, #tpu.memory_space<vmem>>, vector<1x128xf32>
    %21 = vector.broadcast %20 : vector<1x128xf32> to vector<8x128xf32>
    %22 = arith.addf %19, %21 : vector<8x128xf32>
    %cst_17 = arith.constant dense<0xFF800000> : vector<8xf32>
    %23 = vector.multi_reduction <maximumf>, %22, %cst_17 [1] : vector<8x128xf32> to vector<8xf32>
    %24 = vector.shape_cast %23 : vector<8xf32> to vector<8x1xf32>
    %25 = vector.broadcast %24 : vector<8x1xf32> to vector<8x128xf32>
    %26 = arith.subf %22, %25 : vector<8x128xf32>
    %27 = math.exp %26 : vector<8x128xf32>
    %cst_18 = arith.constant dense<0.000000e+00> : vector<8xf32>
    %28 = vector.multi_reduction <add>, %27, %cst_18 [1] : vector<8x128xf32> to vector<8xf32>
    %29 = vector.shape_cast %28 : vector<8xf32> to vector<8x1xf32>
    %30 = tpu.reciprocal %29 {approx = true} : vector<8x1xf32> -> vector<8x1xf32>
    %31 = vector.broadcast %30 : vector<8x1xf32> to vector<8x128xf32>
    %32 = arith.mulf %27, %31 : vector<8x128xf32>
    %33 = vector.extract_strided_slice %32 {offsets = [0, 0], sizes = [8, 8], strides = [1, 1]} : vector<8x128xf32> to vector<8x8xf32>
    %c0_19 = arith.constant 0 : index
    %c0_20 = arith.constant 0 : index
    %34 = vector.load %arg8[%c0_19, %c0_20] : memref<8x8xf32, #tpu.memory_space<vmem>>, vector<8x8xf32>
    tpu.vector_store %arg8[%c0_19, %c0_20], %33 {strides = array<i32>} : memref<8x8xf32, #tpu.memory_space<vmem>>, vector<8x8xf32>,
    return
  }
  func.func @transform_0(%arg0: i32) -> (i32, i32) {
    %c0_i32 = arith.constant 0 : i32
    %c0_i32_0 = arith.constant 0 : i32
    return %arg0, %c0_i32 : i32, i32
  }
  func.func @transform_1(%arg0: i32) -> (i32, i32) {
    %c0_i32 = arith.constant 0 : i32
    %c0_i32_0 = arith.constant 0 : i32
    %c0_i32_1 = arith.constant 0 : i32
    return %c0_i32, %c0_i32_0 : i32, i32
  }
  func.func @transform_2(%arg0: i32) -> (i32, i32) {
    %c0_i32 = arith.constant 0 : i32
    %c0_i32_0 = arith.constant 0 : i32
    %c0_i32_1 = arith.constant 0 : i32
    return %c0_i32, %c0_i32_0 : i32, i32
  }
  func.func @transform_3(%arg0: i32) -> (i32, i32) {
    %c0_i32 = arith.constant 0 : i32
    %c0_i32_0 = arith.constant 0 : i32
    %c0_i32_1 = arith.constant 0 : i32
    return %c0_i32, %c0_i32_0 : i32, i32
  }
  func.func @transform_4(%arg0: i32) -> (i32, i32) {
    %c0_i32 = arith.constant 0 : i32
    %c0_i32_0 = arith.constant 0 : i32
    %c0_i32_1 = arith.constant 0 : i32
    return %c0_i32, %c0_i32_0 : i32, i32
  }
  func.func @transform_5(%arg0: i32) -> (i32, i32) {
    %c0_i32 = arith.constant 0 : i32
    %c0_i32_0 = arith.constant 0 : i32
    %c0_i32_1 = arith.constant 0 : i32
    return %c0_i32, %c0_i32_0 : i32, i32
  }
  func.func @transform_6(%arg0: i32) -> (i32, i32) {
    %c0_i32 = arith.constant 0 : i32
    %c0_i32_0 = arith.constant 0 : i32
    %c0_i32_1 = arith.constant 0 : i32
    return %c0_i32, %c0_i32_0 : i32, i32
  }
  func.func @transform_7(%arg0: i32) -> (i32, i32) {
    %c0_i32 = arith.constant 0 : i32
    %c0_i32_0 = arith.constant 0 : i32
    return %arg0, %c0_i32 : i32, i32
  }
}

</mosaic_0001>

<llo_original>
// kernel: tpu_custom_call.1
$region0: #{tpu_custom_call.1}
  #allocation0 [shape = 'u32[]', space=smem, size = 0x4, offset = 0x4, fixed_abs, tag = 'smem constant byte address 0x4 - core index']
  #allocation1 [shape = 'u32[144,128]{1,0:T(1,128)}', space=vmem, size = 0x12000, scoped, tag = 'internal scratch']
  %s0 = inlined_call_operand.hbm [shape: f32[8,384], index: 0, kind: input, shape index: {}]
  %s1 = inlined_call_operand.hbm [shape: bf16[384,256], index: 1, kind: input, shape index: {}]
  %s2 = inlined_call_operand.vmem [shape: f32[1,256], index: 2, kind: input, shape index: {}]
  %s3 = inlined_call_operand.hbm [shape: bf16[256,128], index: 3, kind: input, shape index: {}]
  %s4 = inlined_call_operand.vmem [shape: f32[1,128], index: 4, kind: input, shape index: {}]
  %s5 = inlined_call_operand.hbm [shape: bf16[128,128], index: 5, kind: input, shape index: {}]
  %s6 = inlined_call_operand.vmem [shape: f32[1,128], index: 6, kind: input, shape index: {}]
  %s7 = inlined_call_operand.hbm [shape: f32[8,8], index: 7, kind: output, shape index: {}]
  %s8 = sld [smem:[#allocation0]]
  $region54: #{tpu_custom_call.1} parent=0
    _
  %s10 = ssub.s32 1, %s8
  %s11 = scalar_select 0, %s10, %s8
  $region1: #{tpu_custom_call.1} parent=0
    #allocation2 [shape = 'u8[12288]{0}', space=vmem, size = 0x3000, scoped, tag = 'input window, operand 0, single buffered']
    #allocation3 [shape = 's32[1]{0}', space=sflag, size = 0x4, scoped, tag = 'scoped memory for tpu_custom_call.1']
    #allocation4 [shape = 's32[1]{0}', space=sflag, size = 0x4, scoped, tag = 'scoped memory for tpu_custom_call.1']
    #allocation5 [shape = 'u8[196608]{0}', space=vmem, size = 0x30000, scoped, tag = 'input window, operand 1, single buffered']
    #allocation6 [shape = 's32[1]{0}', space=sflag, size = 0x4, scoped, tag = 'scoped memory for tpu_custom_call.1']
    #allocation7 [shape = 'u8[65536]{0}', space=vmem, size = 0x10000, scoped, tag = 'input window, operand 3, single buffered']
    #allocation8 [shape = 'u8[32768]{0}', space=vmem, size = 0x8000, scoped, tag = 'input window, operand 5, single buffered']
    #allocation9 [shape = 's32[1]{0}', space=sflag, size = 0x4, scoped, tag = 'scoped memory for tpu_custom_call.1']
    #allocation10 [shape = 'u8[4096]{0}', space=vmem, size = 0x1000, scoped, tag = 'output window, operand 0, single buffered']
    %12 = vsyncpa [#allocation3], 0
    %13 = vsyncpa [#allocation6], 0
    %14 = vsyncpa [#allocation9], 0
    %15 = vsyncpa [#allocation4], 0
    // Predicated region
    $region2: #{tpu_custom_call.1} parent=1 // pred_check
      _
    $region3: #{tpu_custom_call.1} parent=1 // pred_check_branch
      %17 = sbr.rel (0) target = $region5
    $region4: #{tpu_custom_call.1} parent=1 // pred_region
      %s19 = ssub.s32 384, 384
      %20 = vsyncadd [#allocation3], %s19
      %s22 = sshll.u32 [#allocation2], 4
      %s23 = int_to_ptr.vmem [resolvable:$true] %s22
      %25 = dma.hbm_to_vmem [thread:$0]  %s0, 384, %s23, [#allocation3]
    $region5: #{tpu_custom_call.1} parent=1 // pred_fallthru
      _
    // Predicated region
    $region6: #{tpu_custom_call.1} parent=1 // pred_check
      _
    $region7: #{tpu_custom_call.1} parent=1 // pred_check_branch
      %27 = sbr.rel (0) target = $region9
    $region8: #{tpu_custom_call.1} parent=1 // pred_region
      %s29 = ssub.s32 6144, 6144
      %30 = vsyncadd [#allocation6], %s29
      %s31 = sshll.u32 [#allocation5], 4
      %s32 = int_to_ptr.vmem [resolvable:$true] %s31
      %37 = dma.hbm_to_vmem [thread:$0]  %s1, 6144, %s32, [#allocation6], 128, 128, 8
    $region9: #{tpu_custom_call.1} parent=1 // pred_fallthru
      _
    // Predicated region
    $region10: #{tpu_custom_call.1} parent=1 // pred_check
      _
    $region11: #{tpu_custom_call.1} parent=1 // pred_check_branch
      %39 = sbr.rel (0) target = $region13
    $region12: #{tpu_custom_call.1} parent=1 // pred_region
      _
    $region13: #{tpu_custom_call.1} parent=1 // pred_fallthru
      _
    // Predicated region
    $region14: #{tpu_custom_call.1} parent=1 // pred_check
      _
    $region15: #{tpu_custom_call.1} parent=1 // pred_check_branch
      %41 = sbr.rel (0) target = $region17
    $region16: #{tpu_custom_call.1} parent=1 // pred_region
      %s43 = ssub.s32 2048, 2048
      %44 = vsyncadd [#allocation6], %s43
      %s45 = sshll.u32 [#allocation7], 4
      %s46 = int_to_ptr.vmem [resolvable:$true] %s45
      %51 = dma.hbm_to_vmem [thread:$0]  %s3, 2048, %s46, [#allocation6], 64, 64, 4
    $region17: #{tpu_custom_call.1} parent=1 // pred_fallthru
      _
    // Predicated region
    $region18: #{tpu_custom_call.1} parent=1 // pred_check
      _
    $region19: #{tpu_custom_call.1} parent=1 // pred_check_branch
      %53 = sbr.rel (0) target = $region21
    $region20: #{tpu_custom_call.1} parent=1 // pred_region
      _
    $region21: #{tpu_custom_call.1} parent=1 // pred_fallthru
      _
    // Predicated region
    $region22: #{tpu_custom_call.1} parent=1 // pred_check
      _
    $region23: #{tpu_custom_call.1} parent=1 // pred_check_branch
      %55 = sbr.rel (0) target = $region25
    $region24: #{tpu_custom_call.1} parent=1 // pred_region
      %s57 = ssub.s32 1024, 1024
      %58 = vsyncadd [#allocation9], %s57
      %s59 = sshll.u32 [#allocation8], 4
      %s60 = int_to_ptr.vmem [resolvable:$true] %s59
      %65 = dma.hbm_to_vmem [thread:$0]  %s5, 1024, %s60, [#allocation9], 64, 64, 4
    $region25: #{tpu_custom_call.1} parent=1 // pred_fallthru
      _
    // Predicated region
    $region26: #{tpu_custom_call.1} parent=1 // pred_check
      _
    $region27: #{tpu_custom_call.1} parent=1 // pred_check_branch
      %67 = sbr.rel (0) target = $region29
    $region28: #{tpu_custom_call.1} parent=1 // pred_region
      _
    $region29: #{tpu_custom_call.1} parent=1 // pred_fallthru
      _
    // Predicated region
    $region30: #{tpu_custom_call.1} parent=1 // pred_check
      _
    $region31: #{tpu_custom_call.1} parent=1 // pred_check_branch
      %69 = sbr.rel (0) target = $region33
    $region32: #{tpu_custom_call.1} parent=1 // pred_region
      %70 = dma.done [#allocation3], 384
    $region33: #{tpu_custom_call.1} parent=1 // pred_fallthru
      _
    // Predicated region
    $region34: #{tpu_custom_call.1} parent=1 // pred_check
      _
    $region35: #{tpu_custom_call.1} parent=1 // pred_check_branch
      %72 = sbr.rel (0) target = $region37
    $region36: #{tpu_custom_call.1} parent=1 // pred_region
      %73 = dma.done [#allocation6], 6144
    $region37: #{tpu_custom_call.1} parent=1 // pred_fallthru
      _
    // Predicated region
    $region38: #{tpu_custom_call.1} parent=1 // pred_check
      _
    $region39: #{tpu_custom_call.1} parent=1 // pred_check_branch
      %75 = sbr.rel (0) target = $region41
    $region40: #{tpu_custom_call.1} parent=1 // pred_region
      %76 = dma.done [#allocation6], 2048
    $region41: #{tpu_custom_call.1} parent=1 // pred_fallthru
      _
    // Predicated region
    $region42: #{tpu_custom_call.1} parent=1 // pred_check
      _
    $region43: #{tpu_custom_call.1} parent=1 // pred_check_branch
      %78 = sbr.rel (0) target = $region45
    $region44: #{tpu_custom_call.1} parent=1 // pred_region
      %79 = dma.done [#allocation9], 1024
    $region45: #{tpu_custom_call.1} parent=1 // pred_fallthru
      _
    %v81 = vld [vmem:[#allocation2] sm:$0xff]
    %v82 = vld [vmem:[#allocation2 + $0x8] sm:$0xff]
    %v83 = vld [vmem:[#allocation2 + $0x10] sm:$0xff]
    %v84 = vpack.c.bf16 %v81, %v81
    %v85 = vpack.c.bf16 %v82, %v82
    %v86 = vpack.c.bf16 %v83, %v83
    %v87 = vld [vmem:[#allocation5] sm:$0xff]
    %v88 = vld [vmem:[#allocation5 + $0x8] sm:$0xff]
    %v89 = vld [vmem:[#allocation5 + $0x10] sm:$0xff]
    %v90 = vld [vmem:[#allocation5 + $0x18] sm:$0xff]
    %v91 = vld [vmem:[#allocation5 + $0x20] sm:$0xff]
    %v92 = vld [vmem:[#allocation5 + $0x28] sm:$0xff]
    %v93 = vld [vmem:[#allocation5 + $0x30] sm:$0xff]
    %v94 = vld [vmem:[#allocation5 + $0x38] sm:$0xff]
    %v95 = vld [vmem:[#allocation5 + $0x40] sm:$0xff]
    %v96 = vld [vmem:[#allocation5 + $0x48] sm:$0xff]
    %v97 = vld [vmem:[#allocation5 + $0x50] sm:$0xff]
    %v98 = vld [vmem:[#allocation5 + $0x58] sm:$0xff]
    %v99 = vld [vmem:[#allocation5 + $0x60] sm:$0xff]
    %v100 = vld [vmem:[#allocation5 + $0x68] sm:$0xff]
    %v101 = vld [vmem:[#allocation5 + $0x70] sm:$0xff]
    %v102 = vld [vmem:[#allocation5 + $0x78] sm:$0xff]
    %v103 = vld [vmem:[#allocation5 + $0x80] sm:$0xff]
    %v104 = vld [vmem:[#allocation5 + $0x88] sm:$0xff]
    %v105 = vld [vmem:[#allocation5 + $0x90] sm:$0xff]
    %v106 = vld [vmem:[#allocation5 + $0x98] sm:$0xff]
    %v107 = vld [vmem:[#allocation5 + $0xa0] sm:$0xff]
    %v108 = vld [vmem:[#allocation5 + $0xa8] sm:$0xff]
    %v109 = vld [vmem:[#allocation5 + $0xb0] sm:$0xff]
    %v110 = vld [vmem:[#allocation5 + $0xb8] sm:$0xff]
    %v111 = vld [vmem:[#allocation5 + $0xc0] sm:$0xff]
    %v112 = vld [vmem:[#allocation5 + $0xc8] sm:$0xff]
    %v113 = vld [vmem:[#allocation5 + $0xd0] sm:$0xff]
    %v114 = vld [vmem:[#allocation5 + $0xd8] sm:$0xff]
    %v115 = vld [vmem:[#allocation5 + $0xe0] sm:$0xff]
    %v116 = vld [vmem:[#allocation5 + $0xe8] sm:$0xff]
    %v117 = vld [vmem:[#allocation5 + $0xf0] sm:$0xff]
    %v118 = vld [vmem:[#allocation5 + $0xf8] sm:$0xff]
    %v119 = vld [vmem:[#allocation5 + $0x100] sm:$0xff]
    %v120 = vld [vmem:[#allocation5 + $0x108] sm:$0xff]
    %v121 = vld [vmem:[#allocation5 + $0x110] sm:$0xff]
    %v122 = vld [vmem:[#allocation5 + $0x118] sm:$0xff]
    %v123 = vld [vmem:[#allocation5 + $0x120] sm:$0xff]
    %v124 = vld [vmem:[#allocation5 + $0x128] sm:$0xff]
    %v125 = vld [vmem:[#allocation5 + $0x130] sm:$0xff]
    %v126 = vld [vmem:[#allocation5 + $0x138] sm:$0xff]
    %v127 = vld [vmem:[#allocation5 + $0x140] sm:$0xff]
    %v128 = vld [vmem:[#allocation5 + $0x148] sm:$0xff]
    %v129 = vld [vmem:[#allocation5 + $0x150] sm:$0xff]
    %v130 = vld [vmem:[#allocation5 + $0x158] sm:$0xff]
    %v131 = vld [vmem:[#allocation5 + $0x160] sm:$0xff]
    %v132 = vld [vmem:[#allocation5 + $0x168] sm:$0xff]
    %v133 = vld [vmem:[#allocation5 + $0x170] sm:$0xff]
    %v134 = vld [vmem:[#allocation5 + $0x178] sm:$0xff]
    %v135 = vld [vmem:[%s2] sm:$0x3]
    %v137 = vlaneseq
    %v138 = vshrl.u32 %v137, 7
    %v139 = vsub.s32 0, %v138
    %v140 = vrot.slane %v135, %v139
    %v141 = vlaneseq
    %v142 = vshrl.u32 %v141, 7
    %v143 = vsub.s32 1, %v142
    %v144 = vrot.slane %v135, %v143
    %v195 = vunpack.c.l.b16 %v87
    %v196 = vunpack.c.h.b16 %v87
    %v197 = vunpack.c.l.b16 %v88
    %v198 = vunpack.c.h.b16 %v88
    %v199 = vunpack.c.l.b16 %v89
    %v200 = vunpack.c.h.b16 %v89
    %v201 = vunpack.c.l.b16 %v90
    %v202 = vunpack.c.h.b16 %v90
    %v203 = vunpack.c.l.b16 %v91
    %v204 = vunpack.c.h.b16 %v91
    %v205 = vunpack.c.l.b16 %v92
    %v206 = vunpack.c.h.b16 %v92
    %v207 = vunpack.c.l.b16 %v93
    %v208 = vunpack.c.h.b16 %v93
    %v209 = vunpack.c.l.b16 %v94
    %v210 = vunpack.c.h.b16 %v94
    %v211 = vunpack.c.l.b16 %v95
    %v212 = vunpack.c.h.b16 %v95
    %v213 = vunpack.c.l.b16 %v96
    %v214 = vunpack.c.h.b16 %v96
    %v215 = vunpack.c.l.b16 %v97
    %v216 = vunpack.c.h.b16 %v97
    %v217 = vunpack.c.l.b16 %v98
    %v218 = vunpack.c.h.b16 %v98
    %v219 = vunpack.c.l.b16 %v99
    %v220 = vunpack.c.h.b16 %v99
    %v221 = vunpack.c.l.b16 %v100
    %v222 = vunpack.c.h.b16 %v100
    %v223 = vunpack.c.l.b16 %v101
    %v224 = vunpack.c.h.b16 %v101
    %v225 = vunpack.c.l.b16 %v102
    %v226 = vunpack.c.h.b16 %v102
    %v227 = vunpack.c.l.b16 %v103
    %v228 = vunpack.c.h.b16 %v103
    %v229 = vunpack.c.l.b16 %v104
    %v230 = vunpack.c.h.b16 %v104
    %v231 = vunpack.c.l.b16 %v105
    %v232 = vunpack.c.h.b16 %v105
    %v233 = vunpack.c.l.b16 %v106
    %v234 = vunpack.c.h.b16 %v106
    %v235 = vunpack.c.l.b16 %v107
    %v236 = vunpack.c.h.b16 %v107
    %v237 = vunpack.c.l.b16 %v108
    %v238 = vunpack.c.h.b16 %v108
    %v239 = vunpack.c.l.b16 %v109
    %v240 = vunpack.c.h.b16 %v109
    %v241 = vunpack.c.l.b16 %v110
    %v242 = vunpack.c.h.b16 %v110
    %v243 = vunpack.c.l.b16 %v111
    %v244 = vunpack.c.h.b16 %v111
    %v245 = vunpack.c.l.b16 %v112
    %v246 = vunpack.c.h.b16 %v112
    %v247 = vunpack.c.l.b16 %v113
    %v248 = vunpack.c.h.b16 %v113
    %v249 = vunpack.c.l.b16 %v114
    %v250 = vunpack.c.h.b16 %v114
    %v251 = vunpack.c.l.b16 %v115
    %v252 = vunpack.c.h.b16 %v115
    %v253 = vunpack.c.l.b16 %v116
    %v254 = vunpack.c.h.b16 %v116
    %v255 = vunpack.c.l.b16 %v117
    %v256 = vunpack.c.h.b16 %v117
    %v257 = vunpack.c.l.b16 %v118
    %v258 = vunpack.c.h.b16 %v118
    %v259 = vunpack.c.l.b16 %v119
    %v260 = vunpack.c.h.b16 %v119
    %v261 = vunpack.c.l.b16 %v120
    %v262 = vunpack.c.h.b16 %v120
    %v263 = vunpack.c.l.b16 %v121
    %v264 = vunpack.c.h.b16 %v121
    %v265 = vunpack.c.l.b16 %v122
    %v266 = vunpack.c.h.b16 %v122
    %v267 = vunpack.c.l.b16 %v123
    %v268 = vunpack.c.h.b16 %v123
    %v269 = vunpack.c.l.b16 %v124
    %v270 = vunpack.c.h.b16 %v124
    %v271 = vunpack.c.l.b16 %v125
    %v272 = vunpack.c.h.b16 %v125
    %v273 = vunpack.c.l.b16 %v126
    %v274 = vunpack.c.h.b16 %v126
    %v275 = vunpack.c.l.b16 %v127
    %v276 = vunpack.c.h.b16 %v127
    %v277 = vunpack.c.l.b16 %v128
    %v278 = vunpack.c.h.b16 %v128
    %v279 = vunpack.c.l.b16 %v129
    %v280 = vunpack.c.h.b16 %v129
    %v281 = vunpack.c.l.b16 %v130
    %v282 = vunpack.c.h.b16 %v130
    %v283 = vunpack.c.l.b16 %v131
    %v284 = vunpack.c.h.b16 %v131
    %v285 = vunpack.c.l.b16 %v132
    %v286 = vunpack.c.h.b16 %v132
    %v287 = vunpack.c.l.b16 %v133
    %v288 = vunpack.c.h.b16 %v133
    %v289 = vunpack.c.l.b16 %v134
    %v290 = vunpack.c.h.b16 %v134
    %v291 = vpack.c.b16 %v197, %v195
    %v292 = vpack.c.b16 %v198, %v196
    %v293 = vpack.c.b16 %v201, %v199
    %v294 = vpack.c.b16 %v202, %v200
    %v295 = vpack.c.b16 %v205, %v203
    %v296 = vpack.c.b16 %v206, %v204
    %v297 = vpack.c.b16 %v209, %v207
    %v298 = vpack.c.b16 %v210, %v208
    %v299 = vpack.c.b16 %v213, %v211
    %v300 = vpack.c.b16 %v214, %v212
    %v301 = vpack.c.b16 %v217, %v215
    %v302 = vpack.c.b16 %v218, %v216
    %v303 = vpack.c.b16 %v221, %v219
    %v304 = vpack.c.b16 %v222, %v220
    %v305 = vpack.c.b16 %v225, %v223
    %v306 = vpack.c.b16 %v226, %v224
    %v307 = vpack.c.b16 %v229, %v227
    %v308 = vpack.c.b16 %v230, %v228
    %v309 = vpack.c.b16 %v233, %v231
    %v310 = vpack.c.b16 %v234, %v232
    %v311 = vpack.c.b16 %v237, %v235
    %v312 = vpack.c.b16 %v238, %v236
    %v313 = vpack.c.b16 %v241, %v239
    %v314 = vpack.c.b16 %v242, %v240
    %v315 = vpack.c.b16 %v245, %v243
    %v316 = vpack.c.b16 %v246, %v244
    %v317 = vpack.c.b16 %v249, %v247
    %v318 = vpack.c.b16 %v250, %v248
    %v319 = vpack.c.b16 %v253, %v251
    %v320 = vpack.c.b16 %v254, %v252
    %v321 = vpack.c.b16 %v257, %v255
    %v322 = vpack.c.b16 %v258, %v256
    %v323 = vpack.c.b16 %v261, %v259
    %v324 = vpack.c.b16 %v262, %v260
    %v325 = vpack.c.b16 %v265, %v263
    %v326 = vpack.c.b16 %v266, %v264
    %v327 = vpack.c.b16 %v269, %v267
    %v328 = vpack.c.b16 %v270, %v268
    %v329 = vpack.c.b16 %v273, %v271
    %v330 = vpack.c.b16 %v274, %v272
    %v331 = vpack.c.b16 %v277, %v275
    %v332 = vpack.c.b16 %v278, %v276
    %v333 = vpack.c.b16 %v281, %v279
    %v334 = vpack.c.b16 %v282, %v280
    %v335 = vpack.c.b16 %v285, %v283
    %v336 = vpack.c.b16 %v286, %v284
    %v337 = vpack.c.b16 %v289, %v287
    %v338 = vpack.c.b16 %v290, %v288
    %387 = vmatprep.subr.bf16.mxu0 %v292
    %388 = vmatpush1.bf16.msra.mxu0 %v291
    %389 = vmatprep.subr.bf16.mxu0 %v294
    %390 = vmatpush1.bf16.msra.mxu0 %v293
    %391 = vmatprep.subr.bf16.mxu0 %v296
    %392 = vmatpush1.bf16.msra.mxu0 %v295
    %393 = vmatprep.subr.bf16.mxu0 %v298
    %394 = vmatpush1.bf16.msra.mxu0 %v297
    %395 = vmatprep.subr.bf16.mxu0 %v300
    %396 = vmatpush1.bf16.msra.mxu0 %v299
    %397 = vmatprep.subr.bf16.mxu0 %v302
    %398 = vmatpush1.bf16.msra.mxu0 %v301
    %399 = vmatprep.subr.bf16.mxu0 %v304
    %400 = vmatpush1.bf16.msra.mxu0 %v303
    %401 = vmatprep.subr.bf16.mxu0 %v306
    %402 = vmatpush1.bf16.msra.mxu0 %v305
    %403 = vmatprep.subr.bf16.mxu0 %v308
    %404 = vmatpush1.bf16.msra.mxu0 %v307
    %405 = vmatprep.subr.bf16.mxu0 %v310
    %406 = vmatpush1.bf16.msra.mxu0 %v309
    %407 = vmatprep.subr.bf16.mxu0 %v312
    %408 = vmatpush1.bf16.msra.mxu0 %v311
    %409 = vmatprep.subr.bf16.mxu0 %v314
    %410 = vmatpush1.bf16.msra.mxu0 %v313
    %411 = vmatprep.subr.bf16.mxu0 %v316
    %412 = vmatpush1.bf16.msra.mxu0 %v315
    %413 = vmatprep.subr.bf16.mxu0 %v318
    %414 = vmatpush1.bf16.msra.mxu0 %v317
    %415 = vmatprep.subr.bf16.mxu0 %v320
    %416 = vmatpush1.bf16.msra.mxu0 %v319
    %417 = vmatprep.subr.bf16.mxu0 %v322
    %418 = vmatpush1.bf16.msra.mxu0 %v321
    %419 = vmatprep.mubr.bf16.mxu0 %v85
    %420 = vmatmul.mubr.bf16.gmra.mrb[0].mxu0 %v84
    %v421 = vpop.f32.mrb[0].mxu0
    %v422 = vadd.f32 %v140, %v421
    %v423 = vpop.f32.mrb[0].mxu0
    %v424 = vadd.f32 %v144, %v423
    %v425 = vpop.f32.mrb[0].mxu0
    %v426 = vpop.f32.mrb[0].mxu0
    %427 = vdwg.mxu0
    %428 = vmatprep.subr.bf16.mxu0 %v324
    %429 = vmatpush1.bf16.msra.mxu0 %v323
    %430 = vmatprep.subr.bf16.mxu0 %v326
    %431 = vmatpush1.bf16.msra.mxu0 %v325
    %432 = vmatprep.subr.bf16.mxu0 %v328
    %433 = vmatpush1.bf16.msra.mxu0 %v327
    %434 = vmatprep.subr.bf16.mxu0 %v330
    %435 = vmatpush1.bf16.msra.mxu0 %v329
    %436 = vmatprep.subr.bf16.mxu0 %v332
    %437 = vmatpush1.bf16.msra.mxu0 %v331
    %438 = vmatprep.subr.bf16.mxu0 %v334
    %439 = vmatpush1.bf16.msra.mxu0 %v333
    %440 = vmatprep.subr.bf16.mxu0 %v336
    %441 = vmatpush1.bf16.msra.mxu0 %v335
    %442 = vmatprep.subr.bf16.mxu0 %v338
    %443 = vmatpush1.bf16.msra.mxu0 %v337
    %444 = vmatprep.subr.bf16.mxu0 0
    %445 = vmatpush1.bf16.msra.mxu0 0
    %446 = vmatprep.subr.bf16.mxu0 0
    %447 = vmatpush1.bf16.msra.mxu0 0
    %448 = vmatprep.subr.bf16.mxu0 0
    %449 = vmatpush1.bf16.msra.mxu0 0
    %450 = vmatprep.subr.bf16.mxu0 0
    %451 = vmatpush1.bf16.msra.mxu0 0
    %452 = vmatprep.subr.bf16.mxu0 0
    %453 = vmatpush1.bf16.msra.mxu0 0
    %454 = vmatprep.subr.bf16.mxu0 0
    %455 = vmatpush1.bf16.msra.mxu0 0
    %456 = vmatprep.subr.bf16.mxu0 0
    %457 = vmatpush1.bf16.msra.mxu0 0
    %458 = vmatprep.subr.bf16.mxu0 0
    %459 = vmatpush1.bf16.msra.mxu0 0
    %460 = vmatprep.mubr.bf16.mxu0 0
    %461 = vmatmul.mubr.bf16.gmra.mrb[0].mxu0 %v86
    %v462 = vpop.f32.mrb[0].mxu0
    %v463 = vadd.f32 %v422, %v462
    %v464 = vpop.f32.mrb[0].mxu0
    %v465 = vadd.f32 %v424, %v464
    %v466 = vpop.f32.mrb[0].mxu0
    %v467 = vpop.f32.mrb[0].mxu0
    %468 = vdwg.mxu0
    %v469 = vmax.f32 %v463, 0.0
    %v470 = vmax.f32 %v465, 0.0
    %v471 = vpack.c.bf16 %v469, %v469
    %v472 = vpack.c.bf16 %v470, %v470
    %v473 = vld [vmem:[#allocation7] sm:$0xf]
    %v474 = vld [vmem:[#allocation7 + $0x4] sm:$0xf]
    %v475 = vld [vmem:[#allocation7 + $0x8] sm:$0xf]
    %v476 = vld [vmem:[#allocation7 + $0xc] sm:$0xf]
    %v477 = vld [vmem:[#allocation7 + $0x10] sm:$0xf]
    %v478 = vld [vmem:[#allocation7 + $0x14] sm:$0xf]
    %v479 = vld [vmem:[#allocation7 + $0x18] sm:$0xf]
    %v480 = vld [vmem:[#allocation7 + $0x1c] sm:$0xf]
    %v481 = vld [vmem:[#allocation7 + $0x20] sm:$0xf]
    %v482 = vld [vmem:[#allocation7 + $0x24] sm:$0xf]
    %v483 = vld [vmem:[#allocation7 + $0x28] sm:$0xf]
    %v484 = vld [vmem:[#allocation7 + $0x2c] sm:$0xf]
    %v485 = vld [vmem:[#allocation7 + $0x30] sm:$0xf]
    %v486 = vld [vmem:[#allocation7 + $0x34] sm:$0xf]
    %v487 = vld [vmem:[#allocation7 + $0x38] sm:$0xf]
    %v488 = vld [vmem:[#allocation7 + $0x3c] sm:$0xf]
    %v489 = vld [vmem:[#allocation7 + $0x40] sm:$0xf]
    %v490 = vld [vmem:[#allocation7 + $0x44] sm:$0xf]
    %v491 = vld [vmem:[#allocation7 + $0x48] sm:$0xf]
    %v492 = vld [vmem:[#allocation7 + $0x4c] sm:$0xf]
    %v493 = vld [vmem:[#allocation7 + $0x50] sm:$0xf]
    %v494 = vld [vmem:[#allocation7 + $0x54] sm:$0xf]
    %v495 = vld [vmem:[#allocation7 + $0x58] sm:$0xf]
    %v496 = vld [vmem:[#allocation7 + $0x5c] sm:$0xf]
    %v497 = vld [vmem:[#allocation7 + $0x60] sm:$0xf]
    %v498 = vld [vmem:[#allocation7 + $0x64] sm:$0xf]
    %v499 = vld [vmem:[#allocation7 + $0x68] sm:$0xf]
    %v500 = vld [vmem:[#allocation7 + $0x6c] sm:$0xf]
    %v501 = vld [vmem:[#allocation7 + $0x70] sm:$0xf]
    %v502 = vld [vmem:[#allocation7 + $0x74] sm:$0xf]
    %v503 = vld [vmem:[#allocation7 + $0x78] sm:$0xf]
    %v504 = vld [vmem:[#allocation7 + $0x7c] sm:$0xf]
    %v505 = vld [vmem:[%s4] sm:$0x1]
    %v507 = vlaneseq
    %v508 = vshrl.u32 %v507, 7
    %v509 = vsub.s32 0, %v508
    %v510 = vrot.slane %v505, %v509
    %v544 = vunpack.c.l.b16 %v473
    %v545 = vunpack.c.l.b16 %v474
    %v546 = vunpack.c.l.b16 %v475
    %v547 = vunpack.c.l.b16 %v476
    %v548 = vunpack.c.l.b16 %v477
    %v549 = vunpack.c.l.b16 %v478
    %v550 = vunpack.c.l.b16 %v479
    %v551 = vunpack.c.l.b16 %v480
    %v552 = vunpack.c.l.b16 %v481
    %v553 = vunpack.c.l.b16 %v482
    %v554 = vunpack.c.l.b16 %v483
    %v555 = vunpack.c.l.b16 %v484
    %v556 = vunpack.c.l.b16 %v485
    %v557 = vunpack.c.l.b16 %v486
    %v558 = vunpack.c.l.b16 %v487
    %v559 = vunpack.c.l.b16 %v488
    %v560 = vunpack.c.l.b16 %v489
    %v561 = vunpack.c.l.b16 %v490
    %v562 = vunpack.c.l.b16 %v491
    %v563 = vunpack.c.l.b16 %v492
    %v564 = vunpack.c.l.b16 %v493
    %v565 = vunpack.c.l.b16 %v494
    %v566 = vunpack.c.l.b16 %v495
    %v567 = vunpack.c.l.b16 %v496
    %v568 = vunpack.c.l.b16 %v497
    %v569 = vunpack.c.l.b16 %v498
    %v570 = vunpack.c.l.b16 %v499
    %v571 = vunpack.c.l.b16 %v500
    %v572 = vunpack.c.l.b16 %v501
    %v573 = vunpack.c.l.b16 %v502
    %v574 = vunpack.c.l.b16 %v503
    %v575 = vunpack.c.l.b16 %v504
    %v576 = vpack.c.b16 %v545, %v544
    %v577 = vpack.c.b16 %v547, %v546
    %v578 = vpack.c.b16 %v549, %v548
    %v579 = vpack.c.b16 %v551, %v550
    %v580 = vpack.c.b16 %v553, %v552
    %v581 = vpack.c.b16 %v555, %v554
    %v582 = vpack.c.b16 %v557, %v556
    %v583 = vpack.c.b16 %v559, %v558
    %v584 = vpack.c.b16 %v561, %v560
    %v585 = vpack.c.b16 %v563, %v562
    %v586 = vpack.c.b16 %v565, %v564
    %v587 = vpack.c.b16 %v567, %v566
    %v588 = vpack.c.b16 %v569, %v568
    %v589 = vpack.c.b16 %v571, %v570
    %v590 = vpack.c.b16 %v573, %v572
    %v591 = vpack.c.b16 %v575, %v574
    %608 = vmatprep.subr.bf16.mxu0 0
    %609 = vmatpush1.bf16.msra.mxu0 %v576
    %610 = vmatprep.subr.bf16.mxu0 0
    %611 = vmatpush1.bf16.msra.mxu0 %v577
    %612 = vmatprep.subr.bf16.mxu0 0
    %613 = vmatpush1.bf16.msra.mxu0 %v578
    %614 = vmatprep.subr.bf16.mxu0 0
    %615 = vmatpush1.bf16.msra.mxu0 %v579
    %616 = vmatprep.subr.bf16.mxu0 0
    %617 = vmatpush1.bf16.msra.mxu0 %v580
    %618 = vmatprep.subr.bf16.mxu0 0
    %619 = vmatpush1.bf16.msra.mxu0 %v581
    %620 = vmatprep.subr.bf16.mxu0 0
    %621 = vmatpush1.bf16.msra.mxu0 %v582
    %622 = vmatprep.subr.bf16.mxu0 0
    %623 = vmatpush1.bf16.msra.mxu0 %v583
    %624 = vmatprep.subr.bf16.mxu0 0
    %625 = vmatpush1.bf16.msra.mxu0 %v584
    %626 = vmatprep.subr.bf16.mxu0 0
    %627 = vmatpush1.bf16.msra.mxu0 %v585
    %628 = vmatprep.subr.bf16.mxu0 0
    %629 = vmatpush1.bf16.msra.mxu0 %v586
    %630 = vmatprep.subr.bf16.mxu0 0
    %631 = vmatpush1.bf16.msra.mxu0 %v587
    %632 = vmatprep.subr.bf16.mxu0 0
    %633 = vmatpush1.bf16.msra.mxu0 %v588
    %634 = vmatprep.subr.bf16.mxu0 0
    %635 = vmatpush1.bf16.msra.mxu0 %v589
    %636 = vmatprep.subr.bf16.mxu0 0
    %637 = vmatpush1.bf16.msra.mxu0 %v590
    %638 = vmatprep.subr.bf16.mxu0 0
    %639 = vmatpush1.bf16.msra.mxu0 %v591
    %640 = vmatprep.mubr.bf16.mxu0 %v472
    %641 = vmatmul.mubr.bf16.gmra.mrb[0].mxu0 %v471
    %v642 = vpop.f32.mrb[0].mxu0
    %v643 = vadd.f32 %v510, %v642
    %v644 = vpop.f32.mrb[0].mxu0
    %v645 = vpop.f32.mrb[0].mxu0
    %v646 = vpop.f32.mrb[0].mxu0
    %647 = vdwg.mxu0
    %v648 = vmax.f32 %v643, 0.0
    %v649 = vpack.c.bf16 %v648, %v648
    %v650 = vld [vmem:[#allocation8] sm:$0xf]
    %v651 = vld [vmem:[#allocation8 + $0x4] sm:$0xf]
    %v652 = vld [vmem:[#allocation8 + $0x8] sm:$0xf]
    %v653 = vld [vmem:[#allocation8 + $0xc] sm:$0xf]
    %v654 = vld [vmem:[#allocation8 + $0x10] sm:$0xf]
    %v655 = vld [vmem:[#allocation8 + $0x14] sm:$0xf]
    %v656 = vld [vmem:[#allocation8 + $0x18] sm:$0xf]
    %v657 = vld [vmem:[#allocation8 + $0x1c] sm:$0xf]
    %v658 = vld [vmem:[#allocation8 + $0x20] sm:$0xf]
    %v659 = vld [vmem:[#allocation8 + $0x24] sm:$0xf]
    %v660 = vld [vmem:[#allocation8 + $0x28] sm:$0xf]
    %v661 = vld [vmem:[#allocation8 + $0x2c] sm:$0xf]
    %v662 = vld [vmem:[#allocation8 + $0x30] sm:$0xf]
    %v663 = vld [vmem:[#allocation8 + $0x34] sm:$0xf]
    %v664 = vld [vmem:[#allocation8 + $0x38] sm:$0xf]
    %v665 = vld [vmem:[#allocation8 + $0x3c] sm:$0xf]
    %v666 = vld [vmem:[%s6] sm:$0x1]
    %v668 = vlaneseq
    %v669 = vshrl.u32 %v668, 7
    %v670 = vsub.s32 0, %v669
    %v671 = vrot.slane %v666, %v670
    %v689 = vunpack.c.l.b16 %v650
    %v690 = vunpack.c.l.b16 %v651
    %v691 = vunpack.c.l.b16 %v652
    %v692 = vunpack.c.l.b16 %v653
    %v693 = vunpack.c.l.b16 %v654
    %v694 = vunpack.c.l.b16 %v655
    %v695 = vunpack.c.l.b16 %v656
    %v696 = vunpack.c.l.b16 %v657
    %v697 = vunpack.c.l.b16 %v658
    %v698 = vunpack.c.l.b16 %v659
    %v699 = vunpack.c.l.b16 %v660
    %v700 = vunpack.c.l.b16 %v661
    %v701 = vunpack.c.l.b16 %v662
    %v702 = vunpack.c.l.b16 %v663
    %v703 = vunpack.c.l.b16 %v664
    %v704 = vunpack.c.l.b16 %v665
    %v705 = vpack.c.b16 %v690, %v689
    %v706 = vpack.c.b16 %v692, %v691
    %v707 = vpack.c.b16 %v694, %v693
    %v708 = vpack.c.b16 %v696, %v695
    %v709 = vpack.c.b16 %v698, %v697
    %v710 = vpack.c.b16 %v700, %v699
    %v711 = vpack.c.b16 %v702, %v701
    %v712 = vpack.c.b16 %v704, %v703
    %721 = vmatprep.subr.bf16.mxu0 0
    %722 = vmatpush1.bf16.msra.mxu0 %v705
    %723 = vmatprep.subr.bf16.mxu0 0
    %724 = vmatpush1.bf16.msra.mxu0 %v706
    %725 = vmatprep.subr.bf16.mxu0 0
    %726 = vmatpush1.bf16.msra.mxu0 %v707
    %727 = vmatprep.subr.bf16.mxu0 0
    %728 = vmatpush1.bf16.msra.mxu0 %v708
    %729 = vmatprep.subr.bf16.mxu0 0
    %730 = vmatpush1.bf16.msra.mxu0 %v709
    %731 = vmatprep.subr.bf16.mxu0 0
    %732 = vmatpush1.bf16.msra.mxu0 %v710
    %733 = vmatprep.subr.bf16.mxu0 0
    %734 = vmatpush1.bf16.msra.mxu0 %v711
    %735 = vmatprep.subr.bf16.mxu0 0
    %736 = vmatpush1.bf16.msra.mxu0 %v712
    %737 = vmatprep.subr.bf16.mxu0 0
    %738 = vmatpush1.bf16.msra.mxu0 0
    %739 = vmatprep.subr.bf16.mxu0 0
    %740 = vmatpush1.bf16.msra.mxu0 0
    %741 = vmatprep.subr.bf16.mxu0 0
    %742 = vmatpush1.bf16.msra.mxu0 0
    %743 = vmatprep.subr.bf16.mxu0 0
    %744 = vmatpush1.bf16.msra.mxu0 0
    %745 = vmatprep.subr.bf16.mxu0 0
    %746 = vmatpush1.bf16.msra.mxu0 0
    %747 = vmatprep.subr.bf16.mxu0 0
    %748 = vmatpush1.bf16.msra.mxu0 0
    %749 = vmatprep.subr.bf16.mxu0 0
    %750 = vmatpush1.bf16.msra.mxu0 0
    %751 = vmatprep.subr.bf16.mxu0 0
    %752 = vmatpush1.bf16.msra.mxu0 0
    %753 = vmatprep.mubr.bf16.mxu0 0
    %754 = vmatmul.mubr.bf16.gmra.mrb[0].mxu0 %v649
    %v755 = vpop.f32.mrb[0].mxu0
    %v756 = vadd.f32 %v671, %v755
    %v757 = vpop.f32.mrb[0].mxu0
    %v758 = vpop.f32.mrb[0].mxu0
    %v759 = vpop.f32.mrb[0].mxu0
    %760 = vdwg.mxu0
    %761 = vmax.xlane.f32.xlu0 %v756
    %v762 = vpop.xlane.xlu0 %761
    %v763 = vsub.f32 %v756, %v762
    %v764 = vmul.f32 %v763, 1.442695
    %v765 = vpow.pop %v764
    %766 = vadd.xlane.f32.xlu0 %v765
    %v767 = vpop.xlane.xlu0 %766
    %v768 = vrcp.pop %v767
    %v769 = vmul.f32 %v765, %v768
    %vm770 = vcmask 64512
    %771 = vst.msk [vmem:[#allocation10] sm:$0xff] %vm770, %v769
    // Predicated region
    $region46: #{tpu_custom_call.1} parent=1 // pred_check
      _
    $region47: #{tpu_custom_call.1} parent=1 // pred_check_branch
      %773 = sbr.rel (0) target = $region49
    $region48: #{tpu_custom_call.1} parent=1 // pred_region
      %s775 = ssub.s32 128, 128
      %776 = vsyncadd [#allocation4], %s775
      %s778 = sshll.u32 [#allocation10], 4
      %s779 = int_to_ptr.vmem [resolvable:$true] %s778
      %781 = dma.vmem_to_hbm [thread:$0]  %s779, 128, %s7, [#allocation4]
    $region49: #{tpu_custom_call.1} parent=1 // pred_fallthru
      _
    // Predicated region
    $region50: #{tpu_custom_call.1} parent=1 // pred_check
      _
    $region51: #{tpu_custom_call.1} parent=1 // pred_check_branch
      %783 = sbr.rel (0) target = $region53
    $region52: #{tpu_custom_call.1} parent=1 // pred_region
      %784 = dma.done [#allocation4], 128
    $region53: #{tpu_custom_call.1} parent=1 // pred_fallthru
      _
    %785 = vsyncpa [#allocation3], 1
    %786 = vsyncpa [#allocation6], 1
    %787 = vsyncpa [#allocation9], 1
    %788 = vsyncpa [#allocation4], 1

</llo_original>
